<compile_context>
chip_gen: v7x
topology: tpu7x:2x2x1
jax: 0.10.0
libtpu: 0.0.40
codegen_flags: <defaults>
</compile_context>

<pallas_src>
import functools

import jax
import jax.numpy as jnp
from jax.experimental import pallas as pl
from jax.experimental.pallas import tpu as pltpu

LANE = 128  # TPU vreg lane width; hidden/output features padded to this for compute.


def _round_up(n, m):
    return ((n + m - 1) // m) * m


def _iss_kernel(num_out, matmul_dtype, x_ref, w1_ref, b1_ref, alpha_ref,
                w2_ref, b2_ref, o_ref):
    """One batch tile: Linear -> PReLU -> Linear -> masked LogSoftmax.

    Shapes inside the kernel (P = feature dim padded to a multiple of 128):
      x_ref: [TB, F_in], w1_ref: [F_in, P], w2_ref: [P, P],
      b1/alpha/b2: [1, P], o_ref: [TB, num_out]  (only real columns stored).
    """
    # Cast in-kernel (free on VPU) — never pre-cast x in the wrapper.
    x = x_ref[...].astype(matmul_dtype)                          # [TB, F_in]

    # Linear 1 (MXU, f32 accumulation) + bias.
    h = jnp.dot(x, w1_ref[...], preferred_element_type=jnp.float32) + b1_ref[...]

    # PReLU with per-channel alpha, f32 on the VPU (padded lanes are 0 -> unaffected).
    h = jnp.where(h >= 0.0, h, alpha_ref[...] * h)

    # Linear 2 (MXU, f32 accumulation) + bias.
    z = jnp.dot(h.astype(matmul_dtype), w2_ref[...],
                preferred_element_type=jnp.float32) + b2_ref[...]   # [TB, P]

    # LogSoftmax over the lane axis, masking the padded lanes out of max/sum.
    lane = jax.lax.broadcasted_iota(jnp.int32, (1, z.shape[1]), 1)  # (1, P) row
    valid = lane < num_out
    zm = jnp.where(valid, z, jnp.float32(-1e30))
    m = jnp.max(zm, axis=1, keepdims=True)
    e = jnp.exp(zm - m)                     # padded lanes underflow to exactly 0.0
    lse = m + jnp.log(jnp.sum(e, axis=1, keepdims=True))

    # Store only the real num_out columns (8x less writeback than padded f32).
    o_ref[...] = (z - lse)[:, :num_out].astype(o_ref.dtype)


def prepare_params(w1, b1, alpha, w2, b2, param_dtype=jnp.float32):
    """One-time param prep: transpose to [in, out] layout and pad the hidden /
    output feature dimension to a multiple of 128 lanes (zeros).

    NOTE: all parameters are VMEM-resident (~80 KiB total for this model), so
    param_dtype=bfloat16 saves essentially no HBM bandwidth — the bandwidth
    levers are the streamed x reads and the output writeback.  Keep f32 params
    unless you also want bf16 MXU inputs for compute headroom."""
    num_out, num_in = w1.shape
    P = _round_up(num_out, LANE)

    w1t = jnp.zeros((num_in, P), param_dtype)
    w1t = w1t.at[:, :num_out].set(jnp.asarray(w1, param_dtype).T)
    w2t = jnp.zeros((P, P), param_dtype)
    w2t = w2t.at[:num_out, :num_out].set(jnp.asarray(w2, param_dtype).T)

    b1p = jnp.zeros((1, P), jnp.float32).at[:, :num_out].set(
        jnp.asarray(b1, jnp.float32))
    b2p = jnp.zeros((1, P), jnp.float32).at[:, :num_out].set(
        jnp.asarray(b2, jnp.float32))
    a_p = jnp.zeros((1, P), jnp.float32).at[:, :num_out].set(
        jnp.asarray(alpha, jnp.float32))

    return {"w1t": w1t, "b1": b1p, "alpha": a_p, "w2t": w2t, "b2": b2p,
            "num_out": num_out}


def neural_network_iss_forward(x, params, *, block_b=1024, out_dtype=jnp.float32):
    """x: [B, ...] (flattened to [B, num_input]); params from prepare_params().
    Returns log-probabilities [B, num_out] in out_dtype (default float32;
    bfloat16 halves the output writeback, math stays f32 in-kernel)."""
    num_out = params["num_out"]
    P = params["w1t"].shape[1]
    mm_dtype = params["w1t"].dtype

    B = x.shape[0]
    x2d = x.reshape(B, -1)                          # nn.Flatten; no wrapper cast
    F_in = x2d.shape[1]

    # Batch tiling: TB must be a multiple of 8 (f32 sublane rule).  Small B
    # collapses to a single grid step; large B gets block_b-row tiles so each
    # TensorCore sees multiple pipelined steps.
    TB = _round_up(min(block_b, B), 8)
    Bp = _round_up(B, TB)
    if Bp != B:
        x2d = jnp.pad(x2d, ((0, Bp - B), (0, 0)))
    grid = (Bp // TB,)

    resident = lambda i: (0, 0)                     # weights stay VMEM-resident
    kernel = functools.partial(_iss_kernel, num_out, mm_dtype)

    in_esize = jnp.dtype(x2d.dtype).itemsize
    out_esize = jnp.dtype(out_dtype).itemsize
    p_esize = jnp.dtype(mm_dtype).itemsize
    cost = pl.CostEstimate(
        flops=2 * Bp * (F_in + P) * P,
        transcendentals=Bp * (P + 1),               # exp over [Bp, P] + log
        bytes_accessed=(Bp * F_in * in_esize        # x stream in
                        + Bp * num_out * out_esize  # logits stream out (narrow)
                        + (F_in * P + P * P) * p_esize + 3 * P * 4),
    )

    out = pl.pallas_call(
        kernel,
        out_shape=jax.ShapeDtypeStruct((Bp, num_out), out_dtype),
        grid=grid,
        in_specs=[
            pl.BlockSpec((TB, F_in), lambda i: (i, 0)),   # x: tiled over batch
            pl.BlockSpec((F_in, P), resident),            # w1t
            pl.BlockSpec((1, P), resident),               # b1
            pl.BlockSpec((1, P), resident),               # alpha
            pl.BlockSpec((P, P), resident),               # w2t
            pl.BlockSpec((1, P), resident),               # b2
        ],
        out_specs=pl.BlockSpec((TB, num_out), lambda i: (i, 0)),
        compiler_params=pltpu.CompilerParams(
            dimension_semantics=("parallel",),            # megacore / v7x 2 TCs
            vmem_limit_bytes=32 * 1024 * 1024,            # safe on v5e/v6e/v7x
        ),
        cost_estimate=cost,
    )(x2d, params["w1t"], params["b1"], params["alpha"],
      params["w2t"], params["b2"])

    return out if Bp == B else out[:B]


def _reference(x, w1, b1, alpha, w2, b2):
    B = x.shape[0]
    x2d = x.reshape(B, -1).astype(jnp.float32)
    h = x2d @ w1.T + b1
    h = jnp.where(h >= 0.0, h, alpha * h)
    z = h @ w2.T + b2
    return jax.nn.log_softmax(z, axis=1)


if __name__ == "__main__":
    # Small, deterministic synthetic setup (shapes implied by the module).
    batch = 256
    num_input_categories = 32
    num_output_categories = 16

    key = jax.random.PRNGKey(0)
    kx, kw1, kb1, kw2, kb2 = jax.random.split(key, 5)

    x = jax.random.normal(kx, (batch, num_input_categories), dtype=jnp.float32)

    # Deterministic parameter init (shapes match torch Linear / PReLU).
    lim1 = 1.0 / jnp.sqrt(jnp.float32(num_input_categories))
    w1 = jax.random.uniform(kw1, (num_output_categories, num_input_categories),
                            minval=-lim1, maxval=lim1, dtype=jnp.float32)
    b1 = jax.random.uniform(kb1, (num_output_categories,),
                            minval=-lim1, maxval=lim1, dtype=jnp.float32)
    alpha = jnp.full((num_output_categories,), 0.25, dtype=jnp.float32)  # PReLU default
    lim2 = 1.0 / jnp.sqrt(jnp.float32(num_output_categories))
    w2 = jax.random.uniform(kw2, (num_output_categories, num_output_categories),
                            minval=-lim2, maxval=lim2, dtype=jnp.float32)
    b2 = jax.random.uniform(kb2, (num_output_categories,),
                            minval=-lim2, maxval=lim2, dtype=jnp.float32)

    # One-time param prep (transpose + lane padding), then forward.
    # f32 params / f32 output here so the strict reference check holds;
    # out_dtype=jnp.bfloat16 (and/or bf16 params) is available when exactness
    # is not required.
    params = prepare_params(w1, b1, alpha, w2, b2, param_dtype=jnp.float32)
    out = neural_network_iss_forward(x, params, block_b=1024)   # grid=(1,) here
    out = jax.block_until_ready(out)

    ref = _reference(x, w1, b1, alpha, w2, b2)
    assert out.shape == (batch, num_output_categories)
    assert jnp.allclose(out, ref, atol=1e-5, rtol=1e-5), "mismatch vs reference"

    print("KERNEL_OK")
</pallas_src>

<mosaic_0001>
module attributes {stable_mosaic.version = 11 : i64} {
  func.func @_iss_kernel(%arg0: i32, %arg1: memref<256x32xf32, #tpu.memory_space<vmem>>, %arg2: memref<32x128xf32, #tpu.memory_space<vmem>>, %arg3: memref<1x128xf32, #tpu.memory_space<vmem>>, %arg4: memref<1x128xf32, #tpu.memory_space<vmem>>, %arg5: memref<128x128xf32, #tpu.memory_space<vmem>>, %arg6: memref<1x128xf32, #tpu.memory_space<vmem>>, %arg7: memref<256x16xf32, #tpu.memory_space<vmem>>) attributes {dimension_semantics = [#tpu.dimension_semantics<parallel>], iteration_bounds = array<i64: 1>, scalar_prefetch = 0 : i64, scratch_operands = 0 : i64, tpu.core_type = #tpu.core_type<tc>, window_params = [{transform_indices = @transform_0, window_bounds = array<i64: 256, 32>}, {pipeline_mode = #tpu.pipeline_mode<synchronous>, transform_indices = @transform_1, window_bounds = array<i64: 32, 128>}, {pipeline_mode = #tpu.pipeline_mode<synchronous>, transform_indices = @transform_2, window_bounds = array<i64: 1, 128>}, {pipeline_mode = #tpu.pipeline_mode<synchronous>, transform_indices = @transform_3, window_bounds = array<i64: 1, 128>}, {pipeline_mode = #tpu.pipeline_mode<synchronous>, transform_indices = @transform_4, window_bounds = array<i64: 128, 128>}, {pipeline_mode = #tpu.pipeline_mode<synchronous>, transform_indices = @transform_5, window_bounds = array<i64: 1, 128>}, {transform_indices = @transform_6, window_bounds = array<i64: 256, 16>}]} {
    %c0 = arith.constant 0 : index
    %c0_0 = arith.constant 0 : index
    %0 = vector.load %arg1[%c0, %c0_0] : memref<256x32xf32, #tpu.memory_space<vmem>>, vector<256x32xf32>
    %c0_1 = arith.constant 0 : index
    %c0_2 = arith.constant 0 : index
    %1 = vector.load %arg2[%c0_1, %c0_2] : memref<32x128xf32, #tpu.memory_space<vmem>>, vector<32x128xf32>
    %cst = arith.constant dense<0.000000e+00> : vector<256x128xf32>
    %2 = tpu.matmul %0, %1, %cst {dimension_numbers = #tpu.dot_dimension_numbers<[1], [0], [0], [1], [0, 0, 1, 1], [], []>} : vector<256x32xf32>, vector<32x128xf32>, vector<256x128xf32> -> vector<256x128xf32>
    %c0_3 = arith.constant 0 : index
    %c0_4 = arith.constant 0 : index
    %3 = vector.load %arg3[%c0_3, %c0_4] : memref<1x128xf32, #tpu.memory_space<vmem>>, vector<1x128xf32>
    %4 = vector.broadcast %3 : vector<1x128xf32> to vector<256x128xf32>
    %5 = arith.addf %2, %4 : vector<256x128xf32>
    %cst_5 = arith.constant 0.000000e+00 : f32
    %6 = vector.broadcast %cst_5 : f32 to vector<256x128xf32>
    %7 = arith.cmpf oge, %5, %6 : vector<256x128xf32>
    %c0_6 = arith.constant 0 : index
    %c0_7 = arith.constant 0 : index
    %8 = vector.load %arg4[%c0_6, %c0_7] : memref<1x128xf32, #tpu.memory_space<vmem>>, vector<1x128xf32>
    %9 = vector.broadcast %8 : vector<1x128xf32> to vector<256x128xf32>
    %10 = arith.mulf %9, %5 : vector<256x128xf32>
    %11 = arith.select %7, %5, %10 : vector<256x128xi1>, vector<256x128xf32>
    %c0_8 = arith.constant 0 : index
    %c0_9 = arith.constant 0 : index
    %12 = vector.load %arg5[%c0_8, %c0_9] : memref<128x128xf32, #tpu.memory_space<vmem>>, vector<128x128xf32>
    %cst_10 = arith.constant dense<0.000000e+00> : vector<256x128xf32>
    %13 = tpu.matmul %11, %12, %cst_10 {dimension_numbers = #tpu.dot_dimension_numbers<[1], [0], [0], [1], [0, 0, 1, 1], [], []>} : vector<256x128xf32>, vector<128x128xf32>, vector<256x128xf32> -> vector<256x128xf32>
    %c0_11 = arith.constant 0 : index
    %c0_12 = arith.constant 0 : index
    %14 = vector.load %arg6[%c0_11, %c0_12] : memref<1x128xf32, #tpu.memory_space<vmem>>, vector<1x128xf32>
    %15 = vector.broadcast %14 : vector<1x128xf32> to vector<256x128xf32>
    %16 = arith.addf %13, %15 : vector<256x128xf32>
    %17 = tpu.iota {dimensions = array<i32: 1>} : vector<1x128xi32>
    %c16_i32 = arith.constant 16 : i32
    %18 = vector.broadcast %c16_i32 : i32 to vector<1x128xi32>
    %19 = arith.cmpi slt, %17, %18 : vector<1x128xi32>
    %cst_13 = arith.constant -1.000000e+30 : f32
    %20 = vector.shape_cast %19 : vector<1x128xi1> to vector<1x128xi1>
    %21 = vector.broadcast %20 : vector<1x128xi1> to vector<256x128xi1>
    %22 = vector.broadcast %cst_13 : f32 to vector<256x128xf32>
    %23 = arith.select %21, %16, %22 : vector<256x128xi1>, vector<256x128xf32>
    %cst_14 = arith.constant dense<0xFF800000> : vector<256xf32>
    %24 = vector.multi_reduction <maximumf>, %23, %cst_14 [1] : vector<256x128xf32> to vector<256xf32>
    %25 = vector.shape_cast %24 : vector<256xf32> to vector<256x1xf32>
    %26 = vector.broadcast %25 : vector<256x1xf32> to vector<256x128xf32>
    %27 = arith.subf %23, %26 : vector<256x128xf32>
    %28 = math.exp %27 : vector<256x128xf32>
    %cst_15 = arith.constant dense<0.000000e+00> : vector<256xf32>
    %29 = vector.multi_reduction <add>, %28, %cst_15 [1] : vector<256x128xf32> to vector<256xf32>
    %30 = vector.shape_cast %29 : vector<256xf32> to vector<256x1xf32>
    %31 = math.log %30 : vector<256x1xf32>
    %32 = arith.addf %25, %31 : vector<256x1xf32>
    %33 = vector.broadcast %32 : vector<256x1xf32> to vector<256x128xf32>
    %34 = arith.subf %16, %33 : vector<256x128xf32>
    %35 = vector.extract_strided_slice %34 {offsets = [0, 0], sizes = [256, 16], strides = [1, 1]} : vector<256x128xf32> to vector<256x16xf32>
    %c0_16 = arith.constant 0 : index
    %c0_17 = arith.constant 0 : index
    %36 = vector.load %arg7[%c0_16, %c0_17] : memref<256x16xf32, #tpu.memory_space<vmem>>, vector<256x16xf32>
    tpu.vector_store %arg7[%c0_16, %c0_17], %35 {strides = array<i32>} : memref<256x16xf32, #tpu.memory_space<vmem>>, vector<256x16xf32>,
    return
  }
  func.func @transform_0(%arg0: i32) -> (i32, i32) {
    %c0_i32 = arith.constant 0 : i32
    %c0_i32_0 = arith.constant 0 : i32
    return %arg0, %c0_i32 : i32, i32
  }
  func.func @transform_1(%arg0: i32) -> (i32, i32) {
    %c0_i32 = arith.constant 0 : i32
    %c0_i32_0 = arith.constant 0 : i32
    %c0_i32_1 = arith.constant 0 : i32
    return %c0_i32, %c0_i32_0 : i32, i32
  }
  func.func @transform_2(%arg0: i32) -> (i32, i32) {
    %c0_i32 = arith.constant 0 : i32
    %c0_i32_0 = arith.constant 0 : i32
    %c0_i32_1 = arith.constant 0 : i32
    return %c0_i32, %c0_i32_0 : i32, i32
  }
  func.func @transform_3(%arg0: i32) -> (i32, i32) {
    %c0_i32 = arith.constant 0 : i32
    %c0_i32_0 = arith.constant 0 : i32
    %c0_i32_1 = arith.constant 0 : i32
    return %c0_i32, %c0_i32_0 : i32, i32
  }
  func.func @transform_4(%arg0: i32) -> (i32, i32) {
    %c0_i32 = arith.constant 0 : i32
    %c0_i32_0 = arith.constant 0 : i32
    %c0_i32_1 = arith.constant 0 : i32
    return %c0_i32, %c0_i32_0 : i32, i32
  }
  func.func @transform_5(%arg0: i32) -> (i32, i32) {
    %c0_i32 = arith.constant 0 : i32
    %c0_i32_0 = arith.constant 0 : i32
    %c0_i32_1 = arith.constant 0 : i32
    return %c0_i32, %c0_i32_0 : i32, i32
  }
  func.func @transform_6(%arg0: i32) -> (i32, i32) {
    %c0_i32 = arith.constant 0 : i32
    %c0_i32_0 = arith.constant 0 : i32
    return %arg0, %c0_i32 : i32, i32
  }
}

</mosaic_0001>

<llo_original>
// kernel: tpu_custom_call.1
$region0: #{tpu_custom_call.1}
  #allocation0 [shape = 'u32[]', space=smem, size = 0x4, offset = 0x4, fixed_abs, tag = 'smem constant byte address 0x4 - core index']
  #allocation1 [shape = 'u32[144,128]{1,0:T(1,128)}', space=vmem, size = 0x12000, scoped, tag = 'internal scratch']
  %s0 = inlined_call_operand.vmem [shape: f32[256,32], index: 0, kind: input, shape index: {}]
  %s1 = inlined_call_operand.vmem [shape: f32[32,128], index: 1, kind: input, shape index: {}]
  %s2 = inlined_call_operand.vmem [shape: f32[1,128], index: 2, kind: input, shape index: {}]
  %s3 = inlined_call_operand.vmem [shape: f32[1,128], index: 3, kind: input, shape index: {}]
  %s4 = inlined_call_operand.vmem [shape: f32[128,128], index: 4, kind: input, shape index: {}]
  %s5 = inlined_call_operand.vmem [shape: f32[1,128], index: 5, kind: input, shape index: {}]
  %s6 = inlined_call_operand.vmem [shape: f32[256,16], index: 6, kind: output, shape index: {}]
  %s7 = sld [smem:[#allocation0]]
  $region34: #{tpu_custom_call.1} parent=0
    _
  %s9 = ssub.s32 1, %s7
  %s10 = scalar_select 0, %s9, %s7
  // Predicated region
  $region2: #{tpu_custom_call.1} parent=0 // pred_check
    _
  $region3: #{tpu_custom_call.1} parent=0 // pred_check_branch
    %12 = sbr.rel (0) target = $region5
  $region4: #{tpu_custom_call.1} parent=0 // pred_region
    _
  $region5: #{tpu_custom_call.1} parent=0 // pred_fallthru
    _
  // Predicated region
  $region6: #{tpu_custom_call.1} parent=0 // pred_check
    _
  $region7: #{tpu_custom_call.1} parent=0 // pred_check_branch
    %14 = sbr.rel (0) target = $region9
  $region8: #{tpu_custom_call.1} parent=0 // pred_region
    _
  $region9: #{tpu_custom_call.1} parent=0 // pred_fallthru
    _
  // Predicated region
  $region10: #{tpu_custom_call.1} parent=0 // pred_check
    _
  $region11: #{tpu_custom_call.1} parent=0 // pred_check_branch
    %16 = sbr.rel (0) target = $region13
  $region12: #{tpu_custom_call.1} parent=0 // pred_region
    _
  $region13: #{tpu_custom_call.1} parent=0 // pred_fallthru
    _
  // Predicated region
  $region14: #{tpu_custom_call.1} parent=0 // pred_check
    _
  $region15: #{tpu_custom_call.1} parent=0 // pred_check_branch
    %18 = sbr.rel (0) target = $region17
  $region16: #{tpu_custom_call.1} parent=0 // pred_region
    _
  $region17: #{tpu_custom_call.1} parent=0 // pred_fallthru
    _
  // Predicated region
  $region18: #{tpu_custom_call.1} parent=0 // pred_check
    _
  $region19: #{tpu_custom_call.1} parent=0 // pred_check_branch
    %20 = sbr.rel (0) target = $region21
  $region20: #{tpu_custom_call.1} parent=0 // pred_region
    _
  $region21: #{tpu_custom_call.1} parent=0 // pred_fallthru
    _
  // Predicated region
  $region22: #{tpu_custom_call.1} parent=0 // pred_check
    _
  $region23: #{tpu_custom_call.1} parent=0 // pred_check_branch
    %22 = sbr.rel (0) target = $region25
  $region24: #{tpu_custom_call.1} parent=0 // pred_region
    _
  $region25: #{tpu_custom_call.1} parent=0 // pred_fallthru
    _
  %v23 = vld [vmem:[%s0] sm:$0xff]
  %v24 = vld [vmem:[%s0 + $0x8] sm:$0xff]
  %v25 = vld [vmem:[%s0 + $0x10] sm:$0xff]
  %v26 = vld [vmem:[%s0 + $0x18] sm:$0xff]
  %v27 = vld [vmem:[%s0 + $0x20] sm:$0xff]
  %v28 = vld [vmem:[%s0 + $0x28] sm:$0xff]
  %v29 = vld [vmem:[%s0 + $0x30] sm:$0xff]
  %v30 = vld [vmem:[%s0 + $0x38] sm:$0xff]
  %v31 = vld [vmem:[%s0 + $0x40] sm:$0xff]
  %v32 = vld [vmem:[%s0 + $0x48] sm:$0xff]
  %v33 = vld [vmem:[%s0 + $0x50] sm:$0xff]
  %v34 = vld [vmem:[%s0 + $0x58] sm:$0xff]
  %v35 = vld [vmem:[%s0 + $0x60] sm:$0xff]
  %v36 = vld [vmem:[%s0 + $0x68] sm:$0xff]
  %v37 = vld [vmem:[%s0 + $0x70] sm:$0xff]
  %v38 = vld [vmem:[%s0 + $0x78] sm:$0xff]
  %v39 = vld [vmem:[%s0 + $0x80] sm:$0xff]
  %v40 = vld [vmem:[%s0 + $0x88] sm:$0xff]
  %v41 = vld [vmem:[%s0 + $0x90] sm:$0xff]
  %v42 = vld [vmem:[%s0 + $0x98] sm:$0xff]
  %v43 = vld [vmem:[%s0 + $0xa0] sm:$0xff]
  %v44 = vld [vmem:[%s0 + $0xa8] sm:$0xff]
  %v45 = vld [vmem:[%s0 + $0xb0] sm:$0xff]
  %v46 = vld [vmem:[%s0 + $0xb8] sm:$0xff]
  %v47 = vld [vmem:[%s0 + $0xc0] sm:$0xff]
  %v48 = vld [vmem:[%s0 + $0xc8] sm:$0xff]
  %v49 = vld [vmem:[%s0 + $0xd0] sm:$0xff]
  %v50 = vld [vmem:[%s0 + $0xd8] sm:$0xff]
  %v51 = vld [vmem:[%s0 + $0xe0] sm:$0xff]
  %v52 = vld [vmem:[%s0 + $0xe8] sm:$0xff]
  %v53 = vld [vmem:[%s0 + $0xf0] sm:$0xff]
  %v54 = vld [vmem:[%s0 + $0xf8] sm:$0xff]
  %v55 = vld [vmem:[%s1] sm:$0xff]
  %v56 = vld [vmem:[%s1 + $0x8] sm:$0xff]
  %v57 = vld [vmem:[%s1 + $0x10] sm:$0xff]
  %v58 = vld [vmem:[%s1 + $0x18] sm:$0xff]
  %v59 = vld [vmem:[%s2] sm:$0x1]
  %v61 = vlaneseq
  %v62 = vshrl.u32 %v61, 7
  %v63 = vsub.s32 0, %v62
  %v64 = vrot.slane %v59, %v63
  %vm66 = vcmask 261120
  %v68 = vsel %vm66, %v23, 0
  %v71 = vsel %vm66, %v24, 0
  %v74 = vsel %vm66, %v25, 0
  %v77 = vsel %vm66, %v26, 0
  %v80 = vsel %vm66, %v27, 0
  %v83 = vsel %vm66, %v28, 0
  %v86 = vsel %vm66, %v29, 0
  %v89 = vsel %vm66, %v30, 0
  %v92 = vsel %vm66, %v31, 0
  %v95 = vsel %vm66, %v32, 0
  %v98 = vsel %vm66, %v33, 0
  %v101 = vsel %vm66, %v34, 0
  %v104 = vsel %vm66, %v35, 0
  %v107 = vsel %vm66, %v36, 0
  %v110 = vsel %vm66, %v37, 0
  %v113 = vsel %vm66, %v38, 0
  %v116 = vsel %vm66, %v39, 0
  %v119 = vsel %vm66, %v40, 0
  %v122 = vsel %vm66, %v41, 0
  %v125 = vsel %vm66, %v42, 0
  %v128 = vsel %vm66, %v43, 0
  %v131 = vsel %vm66, %v44, 0
  %v134 = vsel %vm66, %v45, 0
  %v137 = vsel %vm66, %v46, 0
  %v140 = vsel %vm66, %v47, 0
  %v143 = vsel %vm66, %v48, 0
  %v146 = vsel %vm66, %v49, 0
  %v149 = vsel %vm66, %v50, 0
  %v152 = vsel %vm66, %v51, 0
  %v155 = vsel %vm66, %v52, 0
  %v158 = vsel %vm66, %v53, 0
  %v161 = vsel %vm66, %v54, 0
  %163 = vmatprep.subr.mxu0 0.0
  %164 = vmatpush1.msra.mxu0 %v55
  %165 = vmatprep.subr.mxu0 0.0
  %166 = vmatpush1.msra.mxu0 %v56
  %167 = vmatprep.subr.mxu0 0.0
  %168 = vmatpush1.msra.mxu0 %v57
  %169 = vmatprep.subr.mxu0 0.0
  %170 = vmatpush1.msra.mxu0 %v58
  %171 = vmatprep.subr.mxu0 0.0
  %172 = vmatpush1.msra.mxu0 0.0
  %173 = vmatprep.subr.mxu0 0.0
  %174 = vmatpush1.msra.mxu0 0.0
  %175 = vmatprep.subr.mxu0 0.0
  %176 = vmatpush1.msra.mxu0 0.0
  %177 = vmatprep.subr.mxu0 0.0
  %178 = vmatpush1.msra.mxu0 0.0
  %179 = vmatprep.subr.mxu0 0.0
  %180 = vmatpush1.msra.mxu0 0.0
  %181 = vmatprep.subr.mxu0 0.0
  %182 = vmatpush1.msra.mxu0 0.0
  %183 = vmatprep.subr.mxu0 0.0
  %184 = vmatpush1.msra.mxu0 0.0
  %185 = vmatprep.subr.mxu0 0.0
  %186 = vmatpush1.msra.mxu0 0.0
  %187 = vmatprep.subr.mxu0 0.0
  %188 = vmatpush1.msra.mxu0 0.0
  %189 = vmatprep.subr.mxu0 0.0
  %190 = vmatpush1.msra.mxu0 0.0
  %191 = vmatprep.subr.mxu0 0.0
  %192 = vmatpush1.msra.mxu0 0.0
  %193 = vmatprep.subr.mxu0 0.0
  %194 = vmatpush1.msra.mxu0 0.0
  %195 = vmatprep.subr.mxu0 0.0
  %196 = vmatpush1.msra.mxu0 0.0
  %197 = vmatprep.subr.mxu0 0.0
  %198 = vmatpush1.msra.mxu0 0.0
  %199 = vmatprep.subr.mxu0 0.0
  %200 = vmatpush1.msra.mxu0 0.0
  %201 = vmatprep.subr.mxu0 0.0
  %202 = vmatpush1.msra.mxu0 0.0
  %203 = vmatprep.subr.mxu0 0.0
  %204 = vmatpush1.msra.mxu0 0.0
  %205 = vmatprep.subr.mxu0 0.0
  %206 = vmatpush1.msra.mxu0 0.0
  %207 = vmatprep.subr.mxu0 0.0
  %208 = vmatpush1.msra.mxu0 0.0
  %209 = vmatprep.subr.mxu0 0.0
  %210 = vmatpush1.msra.mxu0 0.0
  %211 = vmatprep.subr.mxu0 0.0
  %212 = vmatpush1.msra.mxu0 0.0
  %213 = vmatprep.subr.mxu0 0.0
  %214 = vmatpush1.msra.mxu0 0.0
  %215 = vmatprep.subr.mxu0 0.0
  %216 = vmatpush1.msra.mxu0 0.0
  %217 = vmatprep.subr.mxu0 0.0
  %218 = vmatpush1.msra.mxu0 0.0
  %219 = vmatprep.subr.mxu0 0.0
  %220 = vmatpush1.msra.mxu0 0.0
  %221 = vmatprep.subr.mxu0 0.0
  %222 = vmatpush1.msra.mxu0 0.0
  %223 = vmatprep.subr.mxu0 0.0
  %224 = vmatpush1.msra.mxu0 0.0
  %225 = vmatprep.subr.mxu0 0.0
  %226 = vmatpush1.msra.mxu0 0.0
  %227 = vmatprep.mubr.f32.mxu0 0.0
  %228 = vmatmul.mubr.f32.gmra.mrb[0].mxu0 %v68
  %v229 = vpop.f32.mrb[0].mxu0
  %v230 = vadd.f32 %v64, %v229
  %v231 = vpop.f32.mrb[0].mxu0
  %232 = vmatprep.mubr.f32.mxu0 0.0
  %233 = vmatmul.mubr.f32.gmra.mrb[0].mxu0 %v71
  %v234 = vpop.f32.mrb[0].mxu0
  %v235 = vadd.f32 %v64, %v234
  %v236 = vpop.f32.mrb[0].mxu0
  %237 = vmatprep.mubr.f32.mxu0 0.0
  %238 = vmatmul.mubr.f32.gmra.mrb[0].mxu0 %v74
  %v239 = vpop.f32.mrb[0].mxu0
  %v240 = vadd.f32 %v64, %v239
  %v241 = vpop.f32.mrb[0].mxu0
  %242 = vmatprep.mubr.f32.mxu0 0.0
  %243 = vmatmul.mubr.f32.gmra.mrb[0].mxu0 %v77
  %v244 = vpop.f32.mrb[0].mxu0
  %v245 = vadd.f32 %v64, %v244
  %v246 = vpop.f32.mrb[0].mxu0
  %247 = vmatprep.mubr.f32.mxu0 0.0
  %248 = vmatmul.mubr.f32.gmra.mrb[0].mxu0 %v80
  %v249 = vpop.f32.mrb[0].mxu0
  %v250 = vadd.f32 %v64, %v249
  %v251 = vpop.f32.mrb[0].mxu0
  %252 = vmatprep.mubr.f32.mxu0 0.0
  %253 = vmatmul.mubr.f32.gmra.mrb[0].mxu0 %v83
  %v254 = vpop.f32.mrb[0].mxu0
  %v255 = vadd.f32 %v64, %v254
  %v256 = vpop.f32.mrb[0].mxu0
  %257 = vmatprep.mubr.f32.mxu0 0.0
  %258 = vmatmul.mubr.f32.gmra.mrb[0].mxu0 %v86
  %v259 = vpop.f32.mrb[0].mxu0
  %v260 = vadd.f32 %v64, %v259
  %v261 = vpop.f32.mrb[0].mxu0
  %262 = vmatprep.mubr.f32.mxu0 0.0
  %263 = vmatmul.mubr.f32.gmra.mrb[0].mxu0 %v89
  %v264 = vpop.f32.mrb[0].mxu0
  %v265 = vadd.f32 %v64, %v264
  %v266 = vpop.f32.mrb[0].mxu0
  %267 = vmatprep.mubr.f32.mxu0 0.0
  %268 = vmatmul.mubr.f32.gmra.mrb[0].mxu0 %v92
  %v269 = vpop.f32.mrb[0].mxu0
  %v270 = vadd.f32 %v64, %v269
  %v271 = vpop.f32.mrb[0].mxu0
  %272 = vmatprep.mubr.f32.mxu0 0.0
  %273 = vmatmul.mubr.f32.gmra.mrb[0].mxu0 %v95
  %v274 = vpop.f32.mrb[0].mxu0
  %v275 = vadd.f32 %v64, %v274
  %v276 = vpop.f32.mrb[0].mxu0
  %277 = vmatprep.mubr.f32.mxu0 0.0
  %278 = vmatmul.mubr.f32.gmra.mrb[0].mxu0 %v98
  %v279 = vpop.f32.mrb[0].mxu0
  %v280 = vadd.f32 %v64, %v279
  %v281 = vpop.f32.mrb[0].mxu0
  %282 = vmatprep.mubr.f32.mxu0 0.0
  %283 = vmatmul.mubr.f32.gmra.mrb[0].mxu0 %v101
  %v284 = vpop.f32.mrb[0].mxu0
  %v285 = vadd.f32 %v64, %v284
  %v286 = vpop.f32.mrb[0].mxu0
  %287 = vmatprep.mubr.f32.mxu0 0.0
  %288 = vmatmul.mubr.f32.gmra.mrb[0].mxu0 %v104
  %v289 = vpop.f32.mrb[0].mxu0
  %v290 = vadd.f32 %v64, %v289
  %v291 = vpop.f32.mrb[0].mxu0
  %292 = vmatprep.mubr.f32.mxu0 0.0
  %293 = vmatmul.mubr.f32.gmra.mrb[0].mxu0 %v107
  %v294 = vpop.f32.mrb[0].mxu0
  %v295 = vadd.f32 %v64, %v294
  %v296 = vpop.f32.mrb[0].mxu0
  %297 = vmatprep.mubr.f32.mxu0 0.0
  %298 = vmatmul.mubr.f32.gmra.mrb[0].mxu0 %v110
  %v299 = vpop.f32.mrb[0].mxu0
  %v300 = vadd.f32 %v64, %v299
  %v301 = vpop.f32.mrb[0].mxu0
  %302 = vmatprep.mubr.f32.mxu0 0.0
  %303 = vmatmul.mubr.f32.gmra.mrb[0].mxu0 %v113
  %v304 = vpop.f32.mrb[0].mxu0
  %v305 = vadd.f32 %v64, %v304
  %v306 = vpop.f32.mrb[0].mxu0
  %307 = vmatprep.mubr.f32.mxu0 0.0
  %308 = vmatmul.mubr.f32.gmra.mrb[0].mxu0 %v116
  %v309 = vpop.f32.mrb[0].mxu0
  %v310 = vadd.f32 %v64, %v309
  %v311 = vpop.f32.mrb[0].mxu0
  %312 = vmatprep.mubr.f32.mxu0 0.0
  %313 = vmatmul.mubr.f32.gmra.mrb[0].mxu0 %v119
  %v314 = vpop.f32.mrb[0].mxu0
  %v315 = vadd.f32 %v64, %v314
  %v316 = vpop.f32.mrb[0].mxu0
  %317 = vmatprep.mubr.f32.mxu0 0.0
  %318 = vmatmul.mubr.f32.gmra.mrb[0].mxu0 %v122
  %v319 = vpop.f32.mrb[0].mxu0
  %v320 = vadd.f32 %v64, %v319
  %v321 = vpop.f32.mrb[0].mxu0
  %322 = vmatprep.mubr.f32.mxu0 0.0
  %323 = vmatmul.mubr.f32.gmra.mrb[0].mxu0 %v125
  %v324 = vpop.f32.mrb[0].mxu0
  %v325 = vadd.f32 %v64, %v324
  %v326 = vpop.f32.mrb[0].mxu0
  %327 = vmatprep.mubr.f32.mxu0 0.0
  %328 = vmatmul.mubr.f32.gmra.mrb[0].mxu0 %v128
  %v329 = vpop.f32.mrb[0].mxu0
  %v330 = vadd.f32 %v64, %v329
  %v331 = vpop.f32.mrb[0].mxu0
  %332 = vmatprep.mubr.f32.mxu0 0.0
  %333 = vmatmul.mubr.f32.gmra.mrb[0].mxu0 %v131
  %v334 = vpop.f32.mrb[0].mxu0
  %v335 = vadd.f32 %v64, %v334
  %v336 = vpop.f32.mrb[0].mxu0
  %337 = vmatprep.mubr.f32.mxu0 0.0
  %338 = vmatmul.mubr.f32.gmra.mrb[0].mxu0 %v134
  %v339 = vpop.f32.mrb[0].mxu0
  %v340 = vadd.f32 %v64, %v339
  %v341 = vpop.f32.mrb[0].mxu0
  %342 = vmatprep.mubr.f32.mxu0 0.0
  %343 = vmatmul.mubr.f32.gmra.mrb[0].mxu0 %v137
  %v344 = vpop.f32.mrb[0].mxu0
  %v345 = vadd.f32 %v64, %v344
  %v346 = vpop.f32.mrb[0].mxu0
  %347 = vmatprep.mubr.f32.mxu0 0.0
  %348 = vmatmul.mubr.f32.gmra.mrb[0].mxu0 %v140
  %v349 = vpop.f32.mrb[0].mxu0
  %v350 = vadd.f32 %v64, %v349
  %v351 = vpop.f32.mrb[0].mxu0
  %352 = vmatprep.mubr.f32.mxu0 0.0
  %353 = vmatmul.mubr.f32.gmra.mrb[0].mxu0 %v143
  %v354 = vpop.f32.mrb[0].mxu0
  %v355 = vadd.f32 %v64, %v354
  %v356 = vpop.f32.mrb[0].mxu0
  %357 = vmatprep.mubr.f32.mxu0 0.0
  %358 = vmatmul.mubr.f32.gmra.mrb[0].mxu0 %v146
  %v359 = vpop.f32.mrb[0].mxu0
  %v360 = vadd.f32 %v64, %v359
  %v361 = vpop.f32.mrb[0].mxu0
  %362 = vmatprep.mubr.f32.mxu0 0.0
  %363 = vmatmul.mubr.f32.gmra.mrb[0].mxu0 %v149
  %v364 = vpop.f32.mrb[0].mxu0
  %v365 = vadd.f32 %v64, %v364
  %v366 = vpop.f32.mrb[0].mxu0
  %367 = vmatprep.mubr.f32.mxu0 0.0
  %368 = vmatmul.mubr.f32.gmra.mrb[0].mxu0 %v152
  %v369 = vpop.f32.mrb[0].mxu0
  %v370 = vadd.f32 %v64, %v369
  %v371 = vpop.f32.mrb[0].mxu0
  %372 = vmatprep.mubr.f32.mxu0 0.0
  %373 = vmatmul.mubr.f32.gmra.mrb[0].mxu0 %v155
  %v374 = vpop.f32.mrb[0].mxu0
  %v375 = vadd.f32 %v64, %v374
  %v376 = vpop.f32.mrb[0].mxu0
  %377 = vmatprep.mubr.f32.mxu0 0.0
  %378 = vmatmul.mubr.f32.gmra.mrb[0].mxu0 %v158
  %v379 = vpop.f32.mrb[0].mxu0
  %v380 = vadd.f32 %v64, %v379
  %v381 = vpop.f32.mrb[0].mxu0
  %382 = vmatprep.mubr.f32.mxu0 0.0
  %383 = vmatmul.mubr.f32.gmra.mrb[0].mxu0 %v161
  %v384 = vpop.f32.mrb[0].mxu0
  %v385 = vadd.f32 %v64, %v384
  %v386 = vpop.f32.mrb[0].mxu0
  %387 = vdwg.mxu0
  %vm388 = vcmp.ge.f32.partialorder %v230, 0.0
  %vm389 = vcmp.ge.f32.partialorder %v235, 0.0
  %vm390 = vcmp.ge.f32.partialorder %v240, 0.0
  %vm391 = vcmp.ge.f32.partialorder %v245, 0.0
  %vm392 = vcmp.ge.f32.partialorder %v250, 0.0
  %vm393 = vcmp.ge.f32.partialorder %v255, 0.0
  %vm394 = vcmp.ge.f32.partialorder %v260, 0.0
  %vm395 = vcmp.ge.f32.partialorder %v265, 0.0
  %vm396 = vcmp.ge.f32.partialorder %v270, 0.0
  %vm397 = vcmp.ge.f32.partialorder %v275, 0.0
  %vm398 = vcmp.ge.f32.partialorder %v280, 0.0
  %vm399 = vcmp.ge.f32.partialorder %v285, 0.0
  %vm400 = vcmp.ge.f32.partialorder %v290, 0.0
  %vm401 = vcmp.ge.f32.partialorder %v295, 0.0
  %vm402 = vcmp.ge.f32.partialorder %v300, 0.0
  %vm403 = vcmp.ge.f32.partialorder %v305, 0.0
  %vm404 = vcmp.ge.f32.partialorder %v310, 0.0
  %vm405 = vcmp.ge.f32.partialorder %v315, 0.0
  %vm406 = vcmp.ge.f32.partialorder %v320, 0.0
  %vm407 = vcmp.ge.f32.partialorder %v325, 0.0
  %vm408 = vcmp.ge.f32.partialorder %v330, 0.0
  %vm409 = vcmp.ge.f32.partialorder %v335, 0.0
  %vm410 = vcmp.ge.f32.partialorder %v340, 0.0
  %vm411 = vcmp.ge.f32.partialorder %v345, 0.0
  %vm412 = vcmp.ge.f32.partialorder %v350, 0.0
  %vm413 = vcmp.ge.f32.partialorder %v355, 0.0
  %vm414 = vcmp.ge.f32.partialorder %v360, 0.0
  %vm415 = vcmp.ge.f32.partialorder %v365, 0.0
  %vm416 = vcmp.ge.f32.partialorder %v370, 0.0
  %vm417 = vcmp.ge.f32.partialorder %v375, 0.0
  %vm418 = vcmp.ge.f32.partialorder %v380, 0.0
  %vm419 = vcmp.ge.f32.partialorder %v385, 0.0
  %v420 = vld [vmem:[%s3] sm:$0x1]
  %v422 = vlaneseq
  %v423 = vshrl.u32 %v422, 7
  %v424 = vsub.s32 0, %v423
  %v425 = vrot.slane %v420, %v424
  %v427 = vmul.f32 %v425, %v230
  %v428 = vmul.f32 %v425, %v235
  %v429 = vmul.f32 %v425, %v240
  %v430 = vmul.f32 %v425, %v245
  %v431 = vmul.f32 %v425, %v250
  %v432 = vmul.f32 %v425, %v255
  %v433 = vmul.f32 %v425, %v260
  %v434 = vmul.f32 %v425, %v265
  %v435 = vmul.f32 %v425, %v270
  %v436 = vmul.f32 %v425, %v275
  %v437 = vmul.f32 %v425, %v280
  %v438 = vmul.f32 %v425, %v285
  %v439 = vmul.f32 %v425, %v290
  %v440 = vmul.f32 %v425, %v295
  %v441 = vmul.f32 %v425, %v300
  %v442 = vmul.f32 %v425, %v305
  %v443 = vmul.f32 %v425, %v310
  %v444 = vmul.f32 %v425, %v315
  %v445 = vmul.f32 %v425, %v320
  %v446 = vmul.f32 %v425, %v325
  %v447 = vmul.f32 %v425, %v330
  %v448 = vmul.f32 %v425, %v335
  %v449 = vmul.f32 %v425, %v340
  %v450 = vmul.f32 %v425, %v345
  %v451 = vmul.f32 %v425, %v350
  %v452 = vmul.f32 %v425, %v355
  %v453 = vmul.f32 %v425, %v360
  %v454 = vmul.f32 %v425, %v365
  %v455 = vmul.f32 %v425, %v370
  %v456 = vmul.f32 %v425, %v375
  %v457 = vmul.f32 %v425, %v380
  %v458 = vmul.f32 %v425, %v385
  %v459 = vsel %vm388, %v230, %v427
  %v460 = vsel %vm389, %v235, %v428
  %v461 = vsel %vm390, %v240, %v429
  %v462 = vsel %vm391, %v245, %v430
  %v463 = vsel %vm392, %v250, %v431
  %v464 = vsel %vm393, %v255, %v432
  %v465 = vsel %vm394, %v260, %v433
  %v466 = vsel %vm395, %v265, %v434
  %v467 = vsel %vm396, %v270, %v435
  %v468 = vsel %vm397, %v275, %v436
  %v469 = vsel %vm398, %v280, %v437
  %v470 = vsel %vm399, %v285, %v438
  %v471 = vsel %vm400, %v290, %v439
  %v472 = vsel %vm401, %v295, %v440
  %v473 = vsel %vm402, %v300, %v441
  %v474 = vsel %vm403, %v305, %v442
  %v475 = vsel %vm404, %v310, %v443
  %v476 = vsel %vm405, %v315, %v444
  %v477 = vsel %vm406, %v320, %v445
  %v478 = vsel %vm407, %v325, %v446
  %v479 = vsel %vm408, %v330, %v447
  %v480 = vsel %vm409, %v335, %v448
  %v481 = vsel %vm410, %v340, %v449
  %v482 = vsel %vm411, %v345, %v450
  %v483 = vsel %vm412, %v350, %v451
  %v484 = vsel %vm413, %v355, %v452
  %v485 = vsel %vm414, %v360, %v453
  %v486 = vsel %vm415, %v365, %v454
  %v487 = vsel %vm416, %v370, %v455
  %v488 = vsel %vm417, %v375, %v456
  %v489 = vsel %vm418, %v380, %v457
  %v490 = vsel %vm419, %v385, %v458
  %v491 = vld [vmem:[%s4] sm:$0xff]
  %v492 = vld [vmem:[%s4 + $0x8] sm:$0xff]
  %v493 = vld [vmem:[%s4 + $0x10] sm:$0xff]
  %v494 = vld [vmem:[%s4 + $0x18] sm:$0xff]
  %v495 = vld [vmem:[%s4 + $0x20] sm:$0xff]
  %v496 = vld [vmem:[%s4 + $0x28] sm:$0xff]
  %v497 = vld [vmem:[%s4 + $0x30] sm:$0xff]
  %v498 = vld [vmem:[%s4 + $0x38] sm:$0xff]
  %v499 = vld [vmem:[%s4 + $0x40] sm:$0xff]
  %v500 = vld [vmem:[%s4 + $0x48] sm:$0xff]
  %v501 = vld [vmem:[%s4 + $0x50] sm:$0xff]
  %v502 = vld [vmem:[%s4 + $0x58] sm:$0xff]
  %v503 = vld [vmem:[%s4 + $0x60] sm:$0xff]
  %v504 = vld [vmem:[%s4 + $0x68] sm:$0xff]
  %v505 = vld [vmem:[%s4 + $0x70] sm:$0xff]
  %v506 = vld [vmem:[%s4 + $0x78] sm:$0xff]
  %v507 = vld [vmem:[%s5] sm:$0x1]
  %v509 = vlaneseq
  %v510 = vshrl.u32 %v509, 7
  %v511 = vsub.s32 0, %v510
  %v512 = vrot.slane %v507, %v511
  %514 = vmatprep.subr.mxu0 0.0
  %515 = vmatpush1.msra.mxu0 %v491
  %516 = vmatprep.subr.mxu0 0.0
  %517 = vmatpush1.msra.mxu0 %v492
  %518 = vmatprep.subr.mxu0 0.0
  %519 = vmatpush1.msra.mxu0 %v493
  %520 = vmatprep.subr.mxu0 0.0
  %521 = vmatpush1.msra.mxu0 %v494
  %522 = vmatprep.subr.mxu0 0.0
  %523 = vmatpush1.msra.mxu0 %v495
  %524 = vmatprep.subr.mxu0 0.0
  %525 = vmatpush1.msra.mxu0 %v496
  %526 = vmatprep.subr.mxu0 0.0
  %527 = vmatpush1.msra.mxu0 %v497
  %528 = vmatprep.subr.mxu0 0.0
  %529 = vmatpush1.msra.mxu0 %v498
  %530 = vmatprep.subr.mxu0 0.0
  %531 = vmatpush1.msra.mxu0 %v499
  %532 = vmatprep.subr.mxu0 0.0
  %533 = vmatpush1.msra.mxu0 %v500
  %534 = vmatprep.subr.mxu0 0.0
  %535 = vmatpush1.msra.mxu0 %v501
  %536 = vmatprep.subr.mxu0 0.0
  %537 = vmatpush1.msra.mxu0 %v502
  %538 = vmatprep.subr.mxu0 0.0
  %539 = vmatpush1.msra.mxu0 %v503
  %540 = vmatprep.subr.mxu0 0.0
  %541 = vmatpush1.msra.mxu0 %v504
  %542 = vmatprep.subr.mxu0 0.0
  %543 = vmatpush1.msra.mxu0 %v505
  %544 = vmatprep.subr.mxu0 0.0
  %545 = vmatpush1.msra.mxu0 %v506
  %546 = vmatprep.subr.mxu0 0.0
  %547 = vmatpush1.msra.mxu0 0.0
  %548 = vmatprep.subr.mxu0 0.0
  %549 = vmatpush1.msra.mxu0 0.0
  %550 = vmatprep.subr.mxu0 0.0
  %551 = vmatpush1.msra.mxu0 0.0
  %552 = vmatprep.subr.mxu0 0.0
  %553 = vmatpush1.msra.mxu0 0.0
  %554 = vmatprep.subr.mxu0 0.0
  %555 = vmatpush1.msra.mxu0 0.0
  %556 = vmatprep.subr.mxu0 0.0
  %557 = vmatpush1.msra.mxu0 0.0
  %558 = vmatprep.subr.mxu0 0.0
  %559 = vmatpush1.msra.mxu0 0.0
  %560 = vmatprep.subr.mxu0 0.0
  %561 = vmatpush1.msra.mxu0 0.0
  %562 = vmatprep.subr.mxu0 0.0
  %563 = vmatpush1.msra.mxu0 0.0
  %564 = vmatprep.subr.mxu0 0.0
  %565 = vmatpush1.msra.mxu0 0.0
  %566 = vmatprep.subr.mxu0 0.0
  %567 = vmatpush1.msra.mxu0 0.0
  %568 = vmatprep.subr.mxu0 0.0
  %569 = vmatpush1.msra.mxu0 0.0
  %570 = vmatprep.subr.mxu0 0.0
  %571 = vmatpush1.msra.mxu0 0.0
  %572 = vmatprep.subr.mxu0 0.0
  %573 = vmatpush1.msra.mxu0 0.0
  %574 = vmatprep.subr.mxu0 0.0
  %575 = vmatpush1.msra.mxu0 0.0
  %576 = vmatprep.subr.mxu0 0.0
  %577 = vmatpush1.msra.mxu0 0.0
  %578 = vmatprep.mubr.f32.mxu0 0.0
  %579 = vmatmul.mubr.f32.gmra.mrb[0].mxu0 %v459
  %v580 = vpop.f32.mrb[0].mxu0
  %v581 = vadd.f32 %v512, %v580
  %v582 = vpop.f32.mrb[0].mxu0
  %583 = vmatprep.mubr.f32.mxu0 0.0
  %584 = vmatmul.mubr.f32.gmra.mrb[0].mxu0 %v460
  %v585 = vpop.f32.mrb[0].mxu0
  %v586 = vadd.f32 %v512, %v585
  %v587 = vpop.f32.mrb[0].mxu0
  %588 = vmatprep.mubr.f32.mxu0 0.0
  %589 = vmatmul.mubr.f32.gmra.mrb[0].mxu0 %v461
  %v590 = vpop.f32.mrb[0].mxu0
  %v591 = vadd.f32 %v512, %v590
  %v592 = vpop.f32.mrb[0].mxu0
  %593 = vmatprep.mubr.f32.mxu0 0.0
  %594 = vmatmul.mubr.f32.gmra.mrb[0].mxu0 %v462
  %v595 = vpop.f32.mrb[0].mxu0
  %v596 = vadd.f32 %v512, %v595
  %v597 = vpop.f32.mrb[0].mxu0
  %598 = vmatprep.mubr.f32.mxu0 0.0
  %599 = vmatmul.mubr.f32.gmra.mrb[0].mxu0 %v463
  %v600 = vpop.f32.mrb[0].mxu0
  %v601 = vadd.f32 %v512, %v600
  %v602 = vpop.f32.mrb[0].mxu0
  %603 = vmatprep.mubr.f32.mxu0 0.0
  %604 = vmatmul.mubr.f32.gmra.mrb[0].mxu0 %v464
  %v605 = vpop.f32.mrb[0].mxu0
  %v606 = vadd.f32 %v512, %v605
  %v607 = vpop.f32.mrb[0].mxu0
  %608 = vmatprep.mubr.f32.mxu0 0.0
  %609 = vmatmul.mubr.f32.gmra.mrb[0].mxu0 %v465
  %v610 = vpop.f32.mrb[0].mxu0
  %v611 = vadd.f32 %v512, %v610
  %v612 = vpop.f32.mrb[0].mxu0
  %613 = vmatprep.mubr.f32.mxu0 0.0
  %614 = vmatmul.mubr.f32.gmra.mrb[0].mxu0 %v466
  %v615 = vpop.f32.mrb[0].mxu0
  %v616 = vadd.f32 %v512, %v615
  %v617 = vpop.f32.mrb[0].mxu0
  %618 = vmatprep.mubr.f32.mxu0 0.0
  %619 = vmatmul.mubr.f32.gmra.mrb[0].mxu0 %v467
  %v620 = vpop.f32.mrb[0].mxu0
  %v621 = vadd.f32 %v512, %v620
  %v622 = vpop.f32.mrb[0].mxu0
  %623 = vmatprep.mubr.f32.mxu0 0.0
  %624 = vmatmul.mubr.f32.gmra.mrb[0].mxu0 %v468
  %v625 = vpop.f32.mrb[0].mxu0
  %v626 = vadd.f32 %v512, %v625
  %v627 = vpop.f32.mrb[0].mxu0
  %628 = vmatprep.mubr.f32.mxu0 0.0
  %629 = vmatmul.mubr.f32.gmra.mrb[0].mxu0 %v469
  %v630 = vpop.f32.mrb[0].mxu0
  %v631 = vadd.f32 %v512, %v630
  %v632 = vpop.f32.mrb[0].mxu0
  %633 = vmatprep.mubr.f32.mxu0 0.0
  %634 = vmatmul.mubr.f32.gmra.mrb[0].mxu0 %v470
  %v635 = vpop.f32.mrb[0].mxu0
  %v636 = vadd.f32 %v512, %v635
  %v637 = vpop.f32.mrb[0].mxu0
  %638 = vmatprep.mubr.f32.mxu0 0.0
  %639 = vmatmul.mubr.f32.gmra.mrb[0].mxu0 %v471
  %v640 = vpop.f32.mrb[0].mxu0
  %v641 = vadd.f32 %v512, %v640
  %v642 = vpop.f32.mrb[0].mxu0
  %643 = vmatprep.mubr.f32.mxu0 0.0
  %644 = vmatmul.mubr.f32.gmra.mrb[0].mxu0 %v472
  %v645 = vpop.f32.mrb[0].mxu0
  %v646 = vadd.f32 %v512, %v645
  %v647 = vpop.f32.mrb[0].mxu0
  %648 = vmatprep.mubr.f32.mxu0 0.0
  %649 = vmatmul.mubr.f32.gmra.mrb[0].mxu0 %v473
  %v650 = vpop.f32.mrb[0].mxu0
  %v651 = vadd.f32 %v512, %v650
  %v652 = vpop.f32.mrb[0].mxu0
  %653 = vmatprep.mubr.f32.mxu0 0.0
  %654 = vmatmul.mubr.f32.gmra.mrb[0].mxu0 %v474
  %v655 = vpop.f32.mrb[0].mxu0
  %v656 = vadd.f32 %v512, %v655
  %v657 = vpop.f32.mrb[0].mxu0
  %658 = vmatprep.mubr.f32.mxu0 0.0
  %659 = vmatmul.mubr.f32.gmra.mrb[0].mxu0 %v475
  %v660 = vpop.f32.mrb[0].mxu0
  %v661 = vadd.f32 %v512, %v660
  %v662 = vpop.f32.mrb[0].mxu0
  %663 = vmatprep.mubr.f32.mxu0 0.0
  %664 = vmatmul.mubr.f32.gmra.mrb[0].mxu0 %v476
  %v665 = vpop.f32.mrb[0].mxu0
  %v666 = vadd.f32 %v512, %v665
  %v667 = vpop.f32.mrb[0].mxu0
  %668 = vmatprep.mubr.f32.mxu0 0.0
  %669 = vmatmul.mubr.f32.gmra.mrb[0].mxu0 %v477
  %v670 = vpop.f32.mrb[0].mxu0
  %v671 = vadd.f32 %v512, %v670
  %v672 = vpop.f32.mrb[0].mxu0
  %673 = vmatprep.mubr.f32.mxu0 0.0
  %674 = vmatmul.mubr.f32.gmra.mrb[0].mxu0 %v478
  %v675 = vpop.f32.mrb[0].mxu0
  %v676 = vadd.f32 %v512, %v675
  %v677 = vpop.f32.mrb[0].mxu0
  %678 = vmatprep.mubr.f32.mxu0 0.0
  %679 = vmatmul.mubr.f32.gmra.mrb[0].mxu0 %v479
  %v680 = vpop.f32.mrb[0].mxu0
  %v681 = vadd.f32 %v512, %v680
  %v682 = vpop.f32.mrb[0].mxu0
  %683 = vmatprep.mubr.f32.mxu0 0.0
  %684 = vmatmul.mubr.f32.gmra.mrb[0].mxu0 %v480
  %v685 = vpop.f32.mrb[0].mxu0
  %v686 = vadd.f32 %v512, %v685
  %v687 = vpop.f32.mrb[0].mxu0
  %688 = vmatprep.mubr.f32.mxu0 0.0
  %689 = vmatmul.mubr.f32.gmra.mrb[0].mxu0 %v481
  %v690 = vpop.f32.mrb[0].mxu0
  %v691 = vadd.f32 %v512, %v690
  %v692 = vpop.f32.mrb[0].mxu0
  %693 = vmatprep.mubr.f32.mxu0 0.0
  %694 = vmatmul.mubr.f32.gmra.mrb[0].mxu0 %v482
  %v695 = vpop.f32.mrb[0].mxu0
  %v696 = vadd.f32 %v512, %v695
  %v697 = vpop.f32.mrb[0].mxu0
  %698 = vmatprep.mubr.f32.mxu0 0.0
  %699 = vmatmul.mubr.f32.gmra.mrb[0].mxu0 %v483
  %v700 = vpop.f32.mrb[0].mxu0
  %v701 = vadd.f32 %v512, %v700
  %v702 = vpop.f32.mrb[0].mxu0
  %703 = vmatprep.mubr.f32.mxu0 0.0
  %704 = vmatmul.mubr.f32.gmra.mrb[0].mxu0 %v484
  %v705 = vpop.f32.mrb[0].mxu0
  %v706 = vadd.f32 %v512, %v705
  %v707 = vpop.f32.mrb[0].mxu0
  %708 = vmatprep.mubr.f32.mxu0 0.0
  %709 = vmatmul.mubr.f32.gmra.mrb[0].mxu0 %v485
  %v710 = vpop.f32.mrb[0].mxu0
  %v711 = vadd.f32 %v512, %v710
  %v712 = vpop.f32.mrb[0].mxu0
  %713 = vmatprep.mubr.f32.mxu0 0.0
  %714 = vmatmul.mubr.f32.gmra.mrb[0].mxu0 %v486
  %v715 = vpop.f32.mrb[0].mxu0
  %v716 = vadd.f32 %v512, %v715
  %v717 = vpop.f32.mrb[0].mxu0
  %718 = vmatprep.mubr.f32.mxu0 0.0
  %719 = vmatmul.mubr.f32.gmra.mrb[0].mxu0 %v487
  %v720 = vpop.f32.mrb[0].mxu0
  %v721 = vadd.f32 %v512, %v720
  %v722 = vpop.f32.mrb[0].mxu0
  %723 = vmatprep.mubr.f32.mxu0 0.0
  %724 = vmatmul.mubr.f32.gmra.mrb[0].mxu0 %v488
  %v725 = vpop.f32.mrb[0].mxu0
  %v726 = vadd.f32 %v512, %v725
  %v727 = vpop.f32.mrb[0].mxu0
  %728 = vmatprep.mubr.f32.mxu0 0.0
  %729 = vmatmul.mubr.f32.gmra.mrb[0].mxu0 %v489
  %v730 = vpop.f32.mrb[0].mxu0
  %v731 = vadd.f32 %v512, %v730
  %v732 = vpop.f32.mrb[0].mxu0
  %733 = vmatprep.mubr.f32.mxu0 0.0
  %734 = vmatmul.mubr.f32.gmra.mrb[0].mxu0 %v490
  %v735 = vpop.f32.mrb[0].mxu0
  %v736 = vadd.f32 %v512, %v735
  %v737 = vpop.f32.mrb[0].mxu0
  %738 = vdwg.mxu0
  %v739 = vlaneseq
  %v740 = vand.u32 %v739, 127
  %vm741 = vcmp.lt.s32.totalorder %v740, 16
  %v742 = vsel %vm741, 1, 0
  %vm743 = vcmp.eq.s32.totalorder %v742, 1
  %v744 = vsel %vm743, %v581, -1e+30
  %v745 = vsel %vm743, %v586, -1e+30
  %v746 = vsel %vm743, %v591, -1e+30
  %v747 = vsel %vm743, %v596, -1e+30
  %v748 = vsel %vm743, %v601, -1e+30
  %v749 = vsel %vm743, %v606, -1e+30
  %v750 = vsel %vm743, %v611, -1e+30
  %v751 = vsel %vm743, %v616, -1e+30
  %v752 = vsel %vm743, %v621, -1e+30
  %v753 = vsel %vm743, %v626, -1e+30
  %v754 = vsel %vm743, %v631, -1e+30
  %v755 = vsel %vm743, %v636, -1e+30
  %v756 = vsel %vm743, %v641, -1e+30
  %v757 = vsel %vm743, %v646, -1e+30
  %v758 = vsel %vm743, %v651, -1e+30
  %v759 = vsel %vm743, %v656, -1e+30
  %v760 = vsel %vm743, %v661, -1e+30
  %v761 = vsel %vm743, %v666, -1e+30
  %v762 = vsel %vm743, %v671, -1e+30
  %v763 = vsel %vm743, %v676, -1e+30
  %v764 = vsel %vm743, %v681, -1e+30
  %v765 = vsel %vm743, %v686, -1e+30
  %v766 = vsel %vm743, %v691, -1e+30
  %v767 = vsel %vm743, %v696, -1e+30
  %v768 = vsel %vm743, %v701, -1e+30
  %v769 = vsel %vm743, %v706, -1e+30
  %v770 = vsel %vm743, %v711, -1e+30
  %v771 = vsel %vm743, %v716, -1e+30
  %v772 = vsel %vm743, %v721, -1e+30
  %v773 = vsel %vm743, %v726, -1e+30
  %v774 = vsel %vm743, %v731, -1e+30
  %v775 = vsel %vm743, %v736, -1e+30
  %776 = vmax.xlane.f32.xlu0 %v744
  %v777 = vpop.xlane.xlu0 %776
  %778 = vmax.xlane.f32.xlu0 %v745
  %v779 = vpop.xlane.xlu0 %778
  %780 = vmax.xlane.f32.xlu0 %v746
  %v781 = vpop.xlane.xlu0 %780
  %782 = vmax.xlane.f32.xlu0 %v747
  %v783 = vpop.xlane.xlu0 %782
  %784 = vmax.xlane.f32.xlu0 %v748
  %v785 = vpop.xlane.xlu0 %784
  %786 = vmax.xlane.f32.xlu0 %v749
  %v787 = vpop.xlane.xlu0 %786
  %788 = vmax.xlane.f32.xlu0 %v750
  %v789 = vpop.xlane.xlu0 %788
  %790 = vmax.xlane.f32.xlu0 %v751
  %v791 = vpop.xlane.xlu0 %790
  %792 = vmax.xlane.f32.xlu0 %v752
  %v793 = vpop.xlane.xlu0 %792
  %794 = vmax.xlane.f32.xlu0 %v753
  %v795 = vpop.xlane.xlu0 %794
  %796 = vmax.xlane.f32.xlu0 %v754
  %v797 = vpop.xlane.xlu0 %796
  %798 = vmax.xlane.f32.xlu0 %v755
  %v799 = vpop.xlane.xlu0 %798
  %800 = vmax.xlane.f32.xlu0 %v756
  %v801 = vpop.xlane.xlu0 %800
  %802 = vmax.xlane.f32.xlu0 %v757
  %v803 = vpop.xlane.xlu0 %802
  %804 = vmax.xlane.f32.xlu0 %v758
  %v805 = vpop.xlane.xlu0 %804
  %806 = vmax.xlane.f32.xlu0 %v759
  %v807 = vpop.xlane.xlu0 %806
  %808 = vmax.xlane.f32.xlu0 %v760
  %v809 = vpop.xlane.xlu0 %808
  %810 = vmax.xlane.f32.xlu0 %v761
  %v811 = vpop.xlane.xlu0 %810
  %812 = vmax.xlane.f32.xlu0 %v762
  %v813 = vpop.xlane.xlu0 %812
  %814 = vmax.xlane.f32.xlu0 %v763
  %v815 = vpop.xlane.xlu0 %814
  %816 = vmax.xlane.f32.xlu0 %v764
  %v817 = vpop.xlane.xlu0 %816
  %818 = vmax.xlane.f32.xlu0 %v765
  %v819 = vpop.xlane.xlu0 %818
  %820 = vmax.xlane.f32.xlu0 %v766
  %v821 = vpop.xlane.xlu0 %820
  %822 = vmax.xlane.f32.xlu0 %v767
  %v823 = vpop.xlane.xlu0 %822
  %824 = vmax.xlane.f32.xlu0 %v768
  %v825 = vpop.xlane.xlu0 %824
  %826 = vmax.xlane.f32.xlu0 %v769
  %v827 = vpop.xlane.xlu0 %826
  %828 = vmax.xlane.f32.xlu0 %v770
  %v829 = vpop.xlane.xlu0 %828
  %830 = vmax.xlane.f32.xlu0 %v771
  %v831 = vpop.xlane.xlu0 %830
  %832 = vmax.xlane.f32.xlu0 %v772
  %v833 = vpop.xlane.xlu0 %832
  %834 = vmax.xlane.f32.xlu0 %v773
  %v835 = vpop.xlane.xlu0 %834
  %836 = vmax.xlane.f32.xlu0 %v774
  %v837 = vpop.xlane.xlu0 %836
  %838 = vmax.xlane.f32.xlu0 %v775
  %v839 = vpop.xlane.xlu0 %838
  %v840 = vsub.f32 %v744, %v777
  %v841 = vsub.f32 %v745, %v779
  %v842 = vsub.f32 %v746, %v781
  %v843 = vsub.f32 %v747, %v783
  %v844 = vsub.f32 %v748, %v785
  %v845 = vsub.f32 %v749, %v787
  %v846 = vsub.f32 %v750, %v789
  %v847 = vsub.f32 %v751, %v791
  %v848 = vsub.f32 %v752, %v793
  %v849 = vsub.f32 %v753, %v795
  %v850 = vsub.f32 %v754, %v797
  %v851 = vsub.f32 %v755, %v799
  %v852 = vsub.f32 %v756, %v801
  %v853 = vsub.f32 %v757, %v803
  %v854 = vsub.f32 %v758, %v805
  %v855 = vsub.f32 %v759, %v807
  %v856 = vsub.f32 %v760, %v809
  %v857 = vsub.f32 %v761, %v811
  %v858 = vsub.f32 %v762, %v813
  %v859 = vsub.f32 %v763, %v815
  %v860 = vsub.f32 %v764, %v817
  %v861 = vsub.f32 %v765, %v819
  %v862 = vsub.f32 %v766, %v821
  %v863 = vsub.f32 %v767, %v823
  %v864 = vsub.f32 %v768, %v825
  %v865 = vsub.f32 %v769, %v827
  %v866 = vsub.f32 %v770, %v829
  %v867 = vsub.f32 %v771, %v831
  %v868 = vsub.f32 %v772, %v833
  %v869 = vsub.f32 %v773, %v835
  %v870 = vsub.f32 %v774, %v837
  %v871 = vsub.f32 %v775, %v839
  %v872 = vmul.f32 %v840, 1.442695
  %v873 = vpow.pop %v872
  %v874 = vmul.f32 %v841, 1.442695
  %v875 = vpow.pop %v874
  %v876 = vmul.f32 %v842, 1.442695
  %v877 = vpow.pop %v876
  %v878 = vmul.f32 %v843, 1.442695
  %v879 = vpow.pop %v878
  %v880 = vmul.f32 %v844, 1.442695
  %v881 = vpow.pop %v880
  %v882 = vmul.f32 %v845, 1.442695
  %v883 = vpow.pop %v882
  %v884 = vmul.f32 %v846, 1.442695
  %v885 = vpow.pop %v884
  %v886 = vmul.f32 %v847, 1.442695
  %v887 = vpow.pop %v886
  %v888 = vmul.f32 %v848, 1.442695
  %v889 = vpow.pop %v888
  %v890 = vmul.f32 %v849, 1.442695
  %v891 = vpow.pop %v890
  %v892 = vmul.f32 %v850, 1.442695
  %v893 = vpow.pop %v892
  %v894 = vmul.f32 %v851, 1.442695
  %v895 = vpow.pop %v894
  %v896 = vmul.f32 %v852, 1.442695
  %v897 = vpow.pop %v896
  %v898 = vmul.f32 %v853, 1.442695
  %v899 = vpow.pop %v898
  %v900 = vmul.f32 %v854, 1.442695
  %v901 = vpow.pop %v900
  %v902 = vmul.f32 %v855, 1.442695
  %v903 = vpow.pop %v902
  %v904 = vmul.f32 %v856, 1.442695
  %v905 = vpow.pop %v904
  %v906 = vmul.f32 %v857, 1.442695
  %v907 = vpow.pop %v906
  %v908 = vmul.f32 %v858, 1.442695
  %v909 = vpow.pop %v908
  %v910 = vmul.f32 %v859, 1.442695
  %v911 = vpow.pop %v910
  %v912 = vmul.f32 %v860, 1.442695
  %v913 = vpow.pop %v912
  %v914 = vmul.f32 %v861, 1.442695
  %v915 = vpow.pop %v914
  %v916 = vmul.f32 %v862, 1.442695
  %v917 = vpow.pop %v916
  %v918 = vmul.f32 %v863, 1.442695
  %v919 = vpow.pop %v918
  %v920 = vmul.f32 %v864, 1.442695
  %v921 = vpow.pop %v920
  %v922 = vmul.f32 %v865, 1.442695
  %v923 = vpow.pop %v922
  %v924 = vmul.f32 %v866, 1.442695
  %v925 = vpow.pop %v924
  %v926 = vmul.f32 %v867, 1.442695
  %v927 = vpow.pop %v926
  %v928 = vmul.f32 %v868, 1.442695
  %v929 = vpow.pop %v928
  %v930 = vmul.f32 %v869, 1.442695
  %v931 = vpow.pop %v930
  %v932 = vmul.f32 %v870, 1.442695
  %v933 = vpow.pop %v932
  %v934 = vmul.f32 %v871, 1.442695
  %v935 = vpow.pop %v934
  %936 = vadd.xlane.f32.xlu0 %v873
  %v937 = vpop.xlane.xlu0 %936
  %938 = vadd.xlane.f32.xlu0 %v875
  %v939 = vpop.xlane.xlu0 %938
  %940 = vadd.xlane.f32.xlu0 %v877
  %v941 = vpop.xlane.xlu0 %940
  %942 = vadd.xlane.f32.xlu0 %v879
  %v943 = vpop.xlane.xlu0 %942
  %944 = vadd.xlane.f32.xlu0 %v881
  %v945 = vpop.xlane.xlu0 %944
  %946 = vadd.xlane.f32.xlu0 %v883
  %v947 = vpop.xlane.xlu0 %946
  %948 = vadd.xlane.f32.xlu0 %v885
  %v949 = vpop.xlane.xlu0 %948
  %950 = vadd.xlane.f32.xlu0 %v887
  %v951 = vpop.xlane.xlu0 %950
  %952 = vadd.xlane.f32.xlu0 %v889
  %v953 = vpop.xlane.xlu0 %952
  %954 = vadd.xlane.f32.xlu0 %v891
  %v955 = vpop.xlane.xlu0 %954
  %956 = vadd.xlane.f32.xlu0 %v893
  %v957 = vpop.xlane.xlu0 %956
  %958 = vadd.xlane.f32.xlu0 %v895
  %v959 = vpop.xlane.xlu0 %958
  %960 = vadd.xlane.f32.xlu0 %v897
  %v961 = vpop.xlane.xlu0 %960
  %962 = vadd.xlane.f32.xlu0 %v899
  %v963 = vpop.xlane.xlu0 %962
  %964 = vadd.xlane.f32.xlu0 %v901
  %v965 = vpop.xlane.xlu0 %964
  %966 = vadd.xlane.f32.xlu0 %v903
  %v967 = vpop.xlane.xlu0 %966
  %968 = vadd.xlane.f32.xlu0 %v905
  %v969 = vpop.xlane.xlu0 %968
  %970 = vadd.xlane.f32.xlu0 %v907
  %v971 = vpop.xlane.xlu0 %970
  %972 = vadd.xlane.f32.xlu0 %v909
  %v973 = vpop.xlane.xlu0 %972
  %974 = vadd.xlane.f32.xlu0 %v911
  %v975 = vpop.xlane.xlu0 %974
  %976 = vadd.xlane.f32.xlu0 %v913
  %v977 = vpop.xlane.xlu0 %976
  %978 = vadd.xlane.f32.xlu0 %v915
  %v979 = vpop.xlane.xlu0 %978
  %980 = vadd.xlane.f32.xlu0 %v917
  %v981 = vpop.xlane.xlu0 %980
  %982 = vadd.xlane.f32.xlu0 %v919
  %v983 = vpop.xlane.xlu0 %982
  %984 = vadd.xlane.f32.xlu0 %v921
  %v985 = vpop.xlane.xlu0 %984
  %986 = vadd.xlane.f32.xlu0 %v923
  %v987 = vpop.xlane.xlu0 %986
  %988 = vadd.xlane.f32.xlu0 %v925
  %v989 = vpop.xlane.xlu0 %988
  %990 = vadd.xlane.f32.xlu0 %v927
  %v991 = vpop.xlane.xlu0 %990
  %992 = vadd.xlane.f32.xlu0 %v929
  %v993 = vpop.xlane.xlu0 %992
  %994 = vadd.xlane.f32.xlu0 %v931
  %v995 = vpop.xlane.xlu0 %994
  %996 = vadd.xlane.f32.xlu0 %v933
  %v997 = vpop.xlane.xlu0 %996
  %998 = vadd.xlane.f32.xlu0 %v935
  %v999 = vpop.xlane.xlu0 %998
  %v1000 = vlog2.pop %v937
  %v1001 = vmul.f32 %v1000, 0.6931472
  %v1002 = vlog2.pop %v939
  %v1003 = vmul.f32 %v1002, 0.6931472
  %v1004 = vlog2.pop %v941
  %v1005 = vmul.f32 %v1004, 0.6931472
  %v1006 = vlog2.pop %v943
  %v1007 = vmul.f32 %v1006, 0.6931472
  %v1008 = vlog2.pop %v945
  %v1009 = vmul.f32 %v1008, 0.6931472
  %v1010 = vlog2.pop %v947
  %v1011 = vmul.f32 %v1010, 0.6931472
  %v1012 = vlog2.pop %v949
  %v1013 = vmul.f32 %v1012, 0.6931472
  %v1014 = vlog2.pop %v951
  %v1015 = vmul.f32 %v1014, 0.6931472
  %v1016 = vlog2.pop %v953
  %v1017 = vmul.f32 %v1016, 0.6931472
  %v1018 = vlog2.pop %v955
  %v1019 = vmul.f32 %v1018, 0.6931472
  %v1020 = vlog2.pop %v957
  %v1021 = vmul.f32 %v1020, 0.6931472
  %v1022 = vlog2.pop %v959
  %v1023 = vmul.f32 %v1022, 0.6931472
  %v1024 = vlog2.pop %v961
  %v1025 = vmul.f32 %v1024, 0.6931472
  %v1026 = vlog2.pop %v963
  %v1027 = vmul.f32 %v1026, 0.6931472
  %v1028 = vlog2.pop %v965
  %v1029 = vmul.f32 %v1028, 0.6931472
  %v1030 = vlog2.pop %v967
  %v1031 = vmul.f32 %v1030, 0.6931472
  %v1032 = vlog2.pop %v969
  %v1033 = vmul.f32 %v1032, 0.6931472
  %v1034 = vlog2.pop %v971
  %v1035 = vmul.f32 %v1034, 0.6931472
  %v1036 = vlog2.pop %v973
  %v1037 = vmul.f32 %v1036, 0.6931472
  %v1038 = vlog2.pop %v975
  %v1039 = vmul.f32 %v1038, 0.6931472
  %v1040 = vlog2.pop %v977
  %v1041 = vmul.f32 %v1040, 0.6931472
  %v1042 = vlog2.pop %v979
  %v1043 = vmul.f32 %v1042, 0.6931472
  %v1044 = vlog2.pop %v981
  %v1045 = vmul.f32 %v1044, 0.6931472
  %v1046 = vlog2.pop %v983
  %v1047 = vmul.f32 %v1046, 0.6931472
  %v1048 = vlog2.pop %v985
  %v1049 = vmul.f32 %v1048, 0.6931472
  %v1050 = vlog2.pop %v987
  %v1051 = vmul.f32 %v1050, 0.6931472
  %v1052 = vlog2.pop %v989
  %v1053 = vmul.f32 %v1052, 0.6931472
  %v1054 = vlog2.pop %v991
  %v1055 = vmul.f32 %v1054, 0.6931472
  %v1056 = vlog2.pop %v993
  %v1057 = vmul.f32 %v1056, 0.6931472
  %v1058 = vlog2.pop %v995
  %v1059 = vmul.f32 %v1058, 0.6931472
  %v1060 = vlog2.pop %v997
  %v1061 = vmul.f32 %v1060, 0.6931472
  %v1062 = vlog2.pop %v999
  %v1063 = vmul.f32 %v1062, 0.6931472
  %v1064 = vadd.f32 %v777, %v1001
  %v1065 = vadd.f32 %v779, %v1003
  %v1066 = vadd.f32 %v781, %v1005
  %v1067 = vadd.f32 %v783, %v1007
  %v1068 = vadd.f32 %v785, %v1009
  %v1069 = vadd.f32 %v787, %v1011
  %v1070 = vadd.f32 %v789, %v1013
  %v1071 = vadd.f32 %v791, %v1015
  %v1072 = vadd.f32 %v793, %v1017
  %v1073 = vadd.f32 %v795, %v1019
  %v1074 = vadd.f32 %v797, %v1021
  %v1075 = vadd.f32 %v799, %v1023
  %v1076 = vadd.f32 %v801, %v1025
  %v1077 = vadd.f32 %v803, %v1027
  %v1078 = vadd.f32 %v805, %v1029
  %v1079 = vadd.f32 %v807, %v1031
  %v1080 = vadd.f32 %v809, %v1033
  %v1081 = vadd.f32 %v811, %v1035
  %v1082 = vadd.f32 %v813, %v1037
  %v1083 = vadd.f32 %v815, %v1039
  %v1084 = vadd.f32 %v817, %v1041
  %v1085 = vadd.f32 %v819, %v1043
  %v1086 = vadd.f32 %v821, %v1045
  %v1087 = vadd.f32 %v823, %v1047
  %v1088 = vadd.f32 %v825, %v1049
  %v1089 = vadd.f32 %v827, %v1051
  %v1090 = vadd.f32 %v829, %v1053
  %v1091 = vadd.f32 %v831, %v1055
  %v1092 = vadd.f32 %v833, %v1057
  %v1093 = vadd.f32 %v835, %v1059
  %v1094 = vadd.f32 %v837, %v1061
  %v1095 = vadd.f32 %v839, %v1063
  %v1096 = vsub.f32 %v581, %v1064
  %v1097 = vsub.f32 %v586, %v1065
  %v1098 = vsub.f32 %v591, %v1066
  %v1099 = vsub.f32 %v596, %v1067
  %v1100 = vsub.f32 %v601, %v1068
  %v1101 = vsub.f32 %v606, %v1069
  %v1102 = vsub.f32 %v611, %v1070
  %v1103 = vsub.f32 %v616, %v1071
  %v1104 = vsub.f32 %v621, %v1072
  %v1105 = vsub.f32 %v626, %v1073
  %v1106 = vsub.f32 %v631, %v1074
  %v1107 = vsub.f32 %v636, %v1075
  %v1108 = vsub.f32 %v641, %v1076
  %v1109 = vsub.f32 %v646, %v1077
  %v1110 = vsub.f32 %v651, %v1078
  %v1111 = vsub.f32 %v656, %v1079
  %v1112 = vsub.f32 %v661, %v1080
  %v1113 = vsub.f32 %v666, %v1081
  %v1114 = vsub.f32 %v671, %v1082
  %v1115 = vsub.f32 %v676, %v1083
  %v1116 = vsub.f32 %v681, %v1084
  %v1117 = vsub.f32 %v686, %v1085
  %v1118 = vsub.f32 %v691, %v1086
  %v1119 = vsub.f32 %v696, %v1087
  %v1120 = vsub.f32 %v701, %v1088
  %v1121 = vsub.f32 %v706, %v1089
  %v1122 = vsub.f32 %v711, %v1090
  %v1123 = vsub.f32 %v716, %v1091
  %v1124 = vsub.f32 %v721, %v1092
  %v1125 = vsub.f32 %v726, %v1093
  %v1126 = vsub.f32 %v731, %v1094
  %v1127 = vsub.f32 %v736, %v1095
  %vm1128 = vcmask 130048
  %1129 = vst.msk [vmem:[%s6] sm:$0xff] %vm1128, %v1096
  %1130 = vst.msk [vmem:[%s6 + $0x8] sm:$0xff] %vm1128, %v1097
  %1131 = vst.msk [vmem:[%s6 + $0x10] sm:$0xff] %vm1128, %v1098
  %1132 = vst.msk [vmem:[%s6 + $0x18] sm:$0xff] %vm1128, %v1099
  %1133 = vst.msk [vmem:[%s6 + $0x20] sm:$0xff] %vm1128, %v1100
  %1134 = vst.msk [vmem:[%s6 + $0x28] sm:$0xff] %vm1128, %v1101
  %1135 = vst.msk [vmem:[%s6 + $0x30] sm:$0xff] %vm1128, %v1102
  %1136 = vst.msk [vmem:[%s6 + $0x38] sm:$0xff] %vm1128, %v1103
  %1137 = vst.msk [vmem:[%s6 + $0x40] sm:$0xff] %vm1128, %v1104
  %1138 = vst.msk [vmem:[%s6 + $0x48] sm:$0xff] %vm1128, %v1105
  %1139 = vst.msk [vmem:[%s6 + $0x50] sm:$0xff] %vm1128, %v1106
  %1140 = vst.msk [vmem:[%s6 + $0x58] sm:$0xff] %vm1128, %v1107
  %1141 = vst.msk [vmem:[%s6 + $0x60] sm:$0xff] %vm1128, %v1108
  %1142 = vst.msk [vmem:[%s6 + $0x68] sm:$0xff] %vm1128, %v1109
  %1143 = vst.msk [vmem:[%s6 + $0x70] sm:$0xff] %vm1128, %v1110
  %1144 = vst.msk [vmem:[%s6 + $0x78] sm:$0xff] %vm1128, %v1111
  %1145 = vst.msk [vmem:[%s6 + $0x80] sm:$0xff] %vm1128, %v1112
  %1146 = vst.msk [vmem:[%s6 + $0x88] sm:$0xff] %vm1128, %v1113
  %1147 = vst.msk [vmem:[%s6 + $0x90] sm:$0xff] %vm1128, %v1114
  %1148 = vst.msk [vmem:[%s6 + $0x98] sm:$0xff] %vm1128, %v1115
  %1149 = vst.msk [vmem:[%s6 + $0xa0] sm:$0xff] %vm1128, %v1116
  %1150 = vst.msk [vmem:[%s6 + $0xa8] sm:$0xff] %vm1128, %v1117
  %1151 = vst.msk [vmem:[%s6 + $0xb0] sm:$0xff] %vm1128, %v1118
  %1152 = vst.msk [vmem:[%s6 + $0xb8] sm:$0xff] %vm1128, %v1119
  %1153 = vst.msk [vmem:[%s6 + $0xc0] sm:$0xff] %vm1128, %v1120
  %1154 = vst.msk [vmem:[%s6 + $0xc8] sm:$0xff] %vm1128, %v1121
  %1155 = vst.msk [vmem:[%s6 + $0xd0] sm:$0xff] %vm1128, %v1122
  %1156 = vst.msk [vmem:[%s6 + $0xd8] sm:$0xff] %vm1128, %v1123
  %1157 = vst.msk [vmem:[%s6 + $0xe0] sm:$0xff] %vm1128, %v1124
  %1158 = vst.msk [vmem:[%s6 + $0xe8] sm:$0xff] %vm1128, %v1125
  %1159 = vst.msk [vmem:[%s6 + $0xf0] sm:$0xff] %vm1128, %v1126
  %1160 = vst.msk [vmem:[%s6 + $0xf8] sm:$0xff] %vm1128, %v1127
  // Predicated region
  $region26: #{tpu_custom_call.1} parent=0 // pred_check
    _
  $region27: #{tpu_custom_call.1} parent=0 // pred_check_branch
    %1162 = sbr.rel (0) target = $region29
  $region28: #{tpu_custom_call.1} parent=0 // pred_region
    _
  $region29: #{tpu_custom_call.1} parent=0 // pred_fallthru
    _
  // Predicated region
  $region30: #{tpu_custom_call.1} parent=0 // pred_check
    _
  $region31: #{tpu_custom_call.1} parent=0 // pred_check_branch
    %1164 = sbr.rel (0) target = $region33
  $region32: #{tpu_custom_call.1} parent=0 // pred_region
    _
  $region33: #{tpu_custom_call.1} parent=0 // pred_fallthru
    _

</llo_original>
